<compile_context>
chip_gen: v5e
topology: v5e:2x2
jax: 0.10.0
libtpu: 0.0.40
codegen_flags: <defaults>
</compile_context>

<pallas_src>
import functools

import jax
import jax.numpy as jnp
from jax import lax
from jax.experimental import pallas as pl
from jax.experimental.pallas import tpu as pltpu


def _round_up(v, m):
    return ((v + m - 1) // m) * m


def _tensorcores_per_device():
    """Best-effort TC-per-chip detection: 2 on v4/v5p/v7x, else 1."""
    try:
        kind = jax.devices()[0].device_kind.lower()
    except Exception:
        return 1
    if "lite" in kind or "v5e" in kind or "v6e" in kind:
        return 1
    if "v4" in kind or "v5p" in kind or "v7" in kind:
        return 2
    return 1


def _pool_kernel(x_ref, batch_ref, out_ref, *scratch,
                 mode, num_graphs, b_pad, b_blk, n_valid, tn_tile):
    i = pl.program_id(1)                       # node axis (reduction, "arbitrary")

    @pl.when(i == 0)
    def _init():
        if mode == "max":
            out_ref[...] = jnp.full_like(out_ref, -jnp.inf)
        else:
            out_ref[...] = jnp.zeros_like(out_ref)
        if mode == "mean":
            scratch[0][...] = jnp.zeros_like(scratch[0])

    x = x_ref[...]                             # (TN, TD) in native dtype (f32/bf16)
    tn, td = x.shape

    if mode == "max":
        # batch ids in column layout (TN, 1); padded / OOB rows carry id
        # num_graphs and never match a valid graph, so garbage x rows are
        # replaced by -inf via select (no arithmetic, NaN-safe).
        b_col = batch_ref[...]                 # (TN, 1) int32

        def body(b, carry):
            vals = jnp.where(b_col == b, x, -jnp.inf)                 # (TN, TD)
            m = jnp.max(vals, axis=0, keepdims=True).astype(jnp.float32)  # (1, TD)
            cur = out_ref[pl.ds(b, 1), :]
            out_ref[pl.ds(b, 1), :] = jnp.maximum(cur, m)
            return carry

        lax.fori_loop(0, num_graphs, body, 0)
        # TODO(synk): for HBM-roofline max pooling, switch to a sorted-batch /
        # scalar-prefetch segment design (per-graph row offsets via
        # PrefetchScalarGridSpec) so each grid step reduces only one graph's
        # rows instead of masking all graphs per node tile.
    else:
        b_row = batch_ref[...]                 # (1, TN) int32, lane-dense
        # Mask rows past the true node count (last node tile may read past the
        # end of un-padded x; OOB data must not enter the matmul).
        node_idx = i * tn_tile + lax.broadcasted_iota(jnp.int32, (tn, 1), 0)
        xf = jnp.where(node_idx < n_valid, x, jnp.zeros((), x.dtype))

        if x.dtype == jnp.float32:
            # Manual 2-pass hi/lo split: one-hot is exactly 0/1 in bf16, so only
            # x needs splitting.  2 MXU passes with f32 accumulation.
            x_hi = xf.astype(jnp.bfloat16)
            x_lo = (xf - x_hi.astype(jnp.float32)).astype(jnp.bfloat16)
        else:
            x_hi, x_lo = xf, None              # bf16: single pass

        for blk in range(b_pad // b_blk):      # static; b_pad//b_blk is small
            row0 = blk * b_blk
            match = (row0 + lax.broadcasted_iota(jnp.int32, (b_blk, tn), 0)
                     == b_row)                                        # (b_blk, TN)
            onehot = match.astype(jnp.bfloat16)                       # lane-dense
            acc = jnp.dot(onehot, x_hi, preferred_element_type=jnp.float32)
            if x_lo is not None:
                acc = acc + jnp.dot(onehot, x_lo,
                                    preferred_element_type=jnp.float32)
            out_ref[pl.ds(row0, b_blk), :] += acc
            if mode == "mean":
                # Recomputed per feature block on purpose (see header comment):
                # scratch is per-core and the parallel D axis may be sharded.
                scratch[0][pl.ds(row0, b_blk), :] += jnp.sum(
                    match.astype(jnp.float32), axis=1, keepdims=True)

    @pl.when(i == pl.num_programs(1) - 1)
    def _finalize():
        if mode == "mean":
            out_ref[...] = out_ref[...] / jnp.maximum(scratch[0][...], 1.0)


def global_pool(x, batch, num_graphs, pool_cls="mean"):
    """Pallas segment pooling: x [N, D], batch [N] int -> z [num_graphs, D]."""
    assert pool_cls in ("add", "mean", "max")
    if x.dtype not in (jnp.float32, jnp.bfloat16):
        x = x.astype(jnp.float32)
    orig_dtype = x.dtype
    N, D = x.shape
    itemsize = jnp.dtype(x.dtype).itemsize
    cores = _tensorcores_per_device()

    # ---- node tile: large (per-step overhead amortization), mode dependent ----
    node_tile = 512 if pool_cls == "max" else 1024
    if N <= node_tile:
        TN = max(16, _round_up(N, 16))         # 16 covers bf16 sublane packing
    else:
        TN = node_tile

    # ---- feature tile ----
    budget = 8 * 1024 * 1024                   # double-buffered x-tile budget
    TD = D
    if D % 128 == 0:
        divisors = [d for d in range(D, 127, -128) if D % d == 0]
        if cores >= 2 and D >= 256:
            # guarantee >=2 blocks on the "parallel" feature axis (v4/v5p/v7x)
            divisors = [d for d in divisors if d <= D // 2] or [128]
        TD = divisors[-1]
        for d in divisors:                     # largest divisor that fits budget
            if 2 * TN * d * itemsize <= budget:
                TD = d
                break
    # TODO(synk): for multi-TC chips with D <= 128 (unsplittable), split the node
    # axis into 2 parallel partial-sum outputs instead and add them outside.
    while 2 * TN * TD * itemsize > budget and TN > 256:
        TN = max(256, TN // 2)

    N_pad = _round_up(N, TN)

    # ---- graph (output-row) padding / blocking ----
    if num_graphs <= 256:
        B_pad = max(8, _round_up(num_graphs, 8))
        B_blk = B_pad
    else:
        B_pad = _round_up(num_graphs, 256)
        B_blk = 256

    # Only the tiny batch-id vector is padded; x stays untouched in HBM.
    batch = batch.astype(jnp.int32)
    if N_pad != N:
        batch = jnp.pad(batch, (0, N_pad - N), constant_values=num_graphs)

    if pool_cls == "max":
        batch_arr = batch.reshape(N_pad, 1)                     # column layout
        batch_spec = pl.BlockSpec((TN, 1), lambda j, i: (i, 0))
    else:
        batch_arr = batch.reshape(1, N_pad)                     # lane-dense
        batch_spec = pl.BlockSpec((1, TN), lambda j, i: (0, i))

    scratch_shapes = []
    if pool_cls == "mean":
        scratch_shapes.append(pltpu.VMEM((B_pad, 1), jnp.float32))   # counts

    # ---- VMEM limit from actual usage (+headroom), capped ~32 MiB ----
    x_buf = 2 * TN * TD * itemsize
    b_buf = 2 * TN * 4
    out_buf = 2 * B_pad * TD * 4
    scr_buf = B_pad * 4 if pool_cls == "mean" else 0
    est = x_buf + b_buf + out_buf + scr_buf
    vmem_limit = int(max(16 * 1024 * 1024,
                         min(int(est * 1.5), 32 * 1024 * 1024),
                         int(est * 1.25)))

    kernel = functools.partial(
        _pool_kernel, mode=pool_cls, num_graphs=num_graphs,
        b_pad=B_pad, b_blk=B_blk, n_valid=N, tn_tile=TN)

    out = pl.pallas_call(
        kernel,
        out_shape=jax.ShapeDtypeStruct((B_pad, D), jnp.float32),
        grid_spec=pltpu.PrefetchScalarGridSpec(
            num_scalar_prefetch=0,
            grid=(D // TD, N_pad // TN),                         # (parallel, reduce)
            in_specs=[
                pl.BlockSpec((TN, TD), lambda j, i: (i, j)),     # x tile
                batch_spec,
            ],
            out_specs=pl.BlockSpec((B_pad, TD), lambda j, i: (0, j)),
            scratch_shapes=scratch_shapes,
        ),
        compiler_params=pltpu.CompilerParams(
            dimension_semantics=("parallel", "arbitrary"),
            vmem_limit_bytes=vmem_limit),
    )(x, batch_arr)

    return out[:num_graphs].astype(orig_dtype)


class Pooling:
    """JAX mirror of the PyTorch Pooling module (no parameters)."""

    def __init__(self, pool_cls):
        assert pool_cls in ("add", "mean", "max")
        self.pool_cls = pool_cls

    def __call__(self, x, batch, num_graphs):
        return global_pool(x, batch, num_graphs, pool_cls=self.pool_cls)


def _reference(x, batch, num_graphs, pool_cls):
    x = x.astype(jnp.float32)
    if pool_cls == "add":
        return jax.ops.segment_sum(x, batch, num_segments=num_graphs)
    if pool_cls == "mean":
        s = jax.ops.segment_sum(x, batch, num_segments=num_graphs)
        c = jax.ops.segment_sum(jnp.ones((x.shape[0], 1), jnp.float32), batch,
                                num_segments=num_graphs)
        return s / jnp.maximum(c, 1.0)
    # NOTE: empty graphs produce -inf rows (segment_max convention).
    return jax.ops.segment_max(x, batch, num_segments=num_graphs)


def _check(x, batch, num_graphs, atol, rtol, tag):
    ok = True
    for pool_cls in ("add", "mean", "max"):
        z = Pooling(pool_cls)(x, batch, num_graphs)
        z = jax.block_until_ready(z)
        ref = _reference(x, batch, num_graphs, pool_cls)
        if not jnp.allclose(z.astype(jnp.float32), ref, atol=atol, rtol=rtol):
            ok = False
            print(f"MISMATCH [{tag}] pool_cls={pool_cls}")
    return ok


if __name__ == "__main__":
    key = jax.random.PRNGKey(0)
    ok = True

    # Small case matching the module spec: 12 nodes, 32-dim features, 2 graphs.
    N, D, B = 12, 32, 2
    x = jax.random.normal(key, (N, D), dtype=jnp.float32)
    batch = jnp.array([0] * 7 + [1] * 5, dtype=jnp.int32)
    ok &= _check(x, batch, B, atol=1e-4, rtol=1e-4, tag="small")

    # Larger case: multi-step node reduction + masked (partially OOB) tail tile
    # + 128-multiple feature dim exercising the feature-block axis.
    k1, k2 = jax.random.split(key)
    N2, D2, B2 = 2500, 256, 5
    x2 = jax.random.normal(k1, (N2, D2), dtype=jnp.float32)
    batch2 = jnp.sort(jax.random.randint(k2, (N2,), 0, B2)).astype(jnp.int32)
    ok &= _check(x2, batch2, B2, atol=2e-3, rtol=2e-3, tag="large")

    # bf16 input stays bf16 end-to-end (no wrapper upcast), f32 accumulation.
    k3, k4 = jax.random.split(k1)
    N3, D3, B3 = 300, 128, 3
    x3 = jax.random.normal(k3, (N3, D3), dtype=jnp.float32).astype(jnp.bfloat16)
    batch3 = jnp.sort(jax.random.randint(k4, (N3,), 0, B3)).astype(jnp.int32)
    ok &= _check(x3, batch3, B3, atol=2e-2, rtol=2e-2, tag="bf16")

    if ok:
        print("KERNEL_OK")
</pallas_src>

<mosaic_0001>
module attributes {stable_mosaic.version = 11 : i64} {
  func.func @_pool_kernel(%arg0: i32, %arg1: i32, %arg2: memref<16x32xf32, #tpu.memory_space<vmem>>, %arg3: memref<1x16xi32, #tpu.memory_space<vmem>>, %arg4: memref<8x32xf32, #tpu.memory_space<vmem>>) attributes {dimension_semantics = [#tpu.dimension_semantics<parallel>, #tpu.dimension_semantics<arbitrary>], iteration_bounds = array<i64: 1, 1>, scalar_prefetch = 0 : i64, scratch_operands = 0 : i64, tpu.core_type = #tpu.core_type<tc>, window_params = [{transform_indices = @transform_0, window_bounds = array<i64: 16, 32>}, {transform_indices = @transform_1, window_bounds = array<i64: 1, 16>}, {transform_indices = @transform_2, window_bounds = array<i64: 8, 32>}]} {
    %c0_i32 = arith.constant 0 : i32
    %0 = arith.cmpi eq, %arg1, %c0_i32 : i32
    %1 = arith.extui %0 : i1 to i32
    %c0_i32_0 = arith.constant 0 : i32
    %2 = arith.cmpi ne, %1, %c0_i32_0 : i32
    scf.if %2 {
      %cst_11 = arith.constant 0.000000e+00 : f32
      %33 = vector.broadcast %cst_11 : f32 to vector<8x32xf32>
      %c0_12 = arith.constant 0 : index
      %c0_13 = arith.constant 0 : index
      %34 = vector.load %arg4[%c0_12, %c0_13] : memref<8x32xf32, #tpu.memory_space<vmem>>, vector<8x32xf32>
      tpu.vector_store %arg4[%c0_12, %c0_13], %33 {strides = array<i32>} : memref<8x32xf32, #tpu.memory_space<vmem>>, vector<8x32xf32>,
    } else {
    }
    %c0 = arith.constant 0 : index
    %c0_1 = arith.constant 0 : index
    %3 = vector.load %arg2[%c0, %c0_1] : memref<16x32xf32, #tpu.memory_space<vmem>>, vector<16x32xf32>
    %c0_2 = arith.constant 0 : index
    %c0_3 = arith.constant 0 : index
    %4 = vector.load %arg3[%c0_2, %c0_3] : memref<1x16xi32, #tpu.memory_space<vmem>>, vector<1x16xi32>
    %c16_i32 = arith.constant 16 : i32
    %5 = arith.muli %arg1, %c16_i32 : i32
    %6 = tpu.iota {dimensions = array<i32: 0>} : vector<16x1xi32>
    %7 = vector.broadcast %5 : i32 to vector<16x1xi32>
    %8 = arith.addi %7, %6 : vector<16x1xi32>
    %c12_i32 = arith.constant 12 : i32
    %9 = vector.broadcast %c12_i32 : i32 to vector<16x1xi32>
    %10 = arith.cmpi slt, %8, %9 : vector<16x1xi32>
    %cst = arith.constant 0.000000e+00 : f32
    %11 = vector.shape_cast %10 : vector<16x1xi1> to vector<16x1xi1>
    %12 = vector.broadcast %11 : vector<16x1xi1> to vector<16x32xi1>
    %13 = vector.broadcast %cst : f32 to vector<16x32xf32>
    %14 = arith.select %12, %3, %13 : vector<16x32xi1>, vector<16x32xf32>
    %15 = arith.truncf %14 : vector<16x32xf32> to vector<16x32xbf16>
    %16 = arith.extf %15 : vector<16x32xbf16> to vector<16x32xf32>
    %17 = arith.subf %14, %16 : vector<16x32xf32>
    %18 = arith.truncf %17 : vector<16x32xf32> to vector<16x32xbf16>
    %19 = tpu.iota {dimensions = array<i32: 0>} : vector<8x16xi32>
    %c0_i32_4 = arith.constant 0 : i32
    %20 = vector.broadcast %c0_i32_4 : i32 to vector<8x16xi32>
    %21 = arith.addi %20, %19 : vector<8x16xi32>
    %22 = vector.broadcast %4 : vector<1x16xi32> to vector<8x16xi32>
    %23 = arith.cmpi eq, %21, %22 : vector<8x16xi32>
    %24 = arith.extui %23 : vector<8x16xi1> to vector<8x16xi32>
    %25 = arith.sitofp %24 : vector<8x16xi32> to vector<8x16xf32>
    %26 = arith.truncf %25 : vector<8x16xf32> to vector<8x16xbf16>
    %cst_5 = arith.constant dense<0.000000e+00> : vector<8x32xf32>
    %27 = tpu.matmul %26, %15, %cst_5 {dimension_numbers = #tpu.dot_dimension_numbers<[1], [0], [0], [1], [0, 0, 1, 1], [], []>} : vector<8x16xbf16>, vector<16x32xbf16>, vector<8x32xf32> -> vector<8x32xf32>
    %cst_6 = arith.constant dense<0.000000e+00> : vector<8x32xf32>
    %28 = tpu.matmul %26, %18, %cst_6 {dimension_numbers = #tpu.dot_dimension_numbers<[1], [0], [0], [1], [0, 0, 1, 1], [], []>} : vector<8x16xbf16>, vector<16x32xbf16>, vector<8x32xf32> -> vector<8x32xf32>
    %29 = arith.addf %27, %28 : vector<8x32xf32>
    %c0_7 = arith.constant 0 : index
    %c0_8 = arith.constant 0 : index
    %30 = vector.load %arg4[%c0_7, %c0_8] : memref<8x32xf32, #tpu.memory_space<vmem>>, vector<8x32xf32>
    %31 = arith.addf %30, %29 : vector<8x32xf32>
    %c0_9 = arith.constant 0 : index
    %c0_10 = arith.constant 0 : index
    %32 = vector.load %arg4[%c0_9, %c0_10] : memref<8x32xf32, #tpu.memory_space<vmem>>, vector<8x32xf32>
    tpu.vector_store %arg4[%c0_9, %c0_10], %31 {strides = array<i32>} : memref<8x32xf32, #tpu.memory_space<vmem>>, vector<8x32xf32>,
    return
  }
  func.func @transform_0(%arg0: i32, %arg1: i32) -> (i32, i32) {
    %c0_i32 = arith.constant 0 : i32
    return %arg1, %arg0 : i32, i32
  }
  func.func @transform_1(%arg0: i32, %arg1: i32) -> (i32, i32) {
    %c0_i32 = arith.constant 0 : i32
    %c0_i32_0 = arith.constant 0 : i32
    return %c0_i32, %arg1 : i32, i32
  }
  func.func @transform_2(%arg0: i32, %arg1: i32) -> (i32, i32) {
    %c0_i32 = arith.constant 0 : i32
    %c0_i32_0 = arith.constant 0 : i32
    return %c0_i32, %arg0 : i32, i32
  }
}

</mosaic_0001>

<llo_original>
// kernel: tpu_custom_call.1
$region0: #{tpu_custom_call.1}
  #allocation0 [shape = 'u32[]', space=smem, size = 0x4, offset = 0x4, fixed_abs, tag = 'smem constant byte address 0x4 - core index']
  #allocation1 [shape = 'u32[72,128]{1,0:T(1,128)}', space=vmem, size = 0x9000, scoped, tag = 'internal scratch']
  %s0 = inlined_call_operand.hbm [shape: f32[12,32], index: 0, kind: input, shape index: {}]
  %s1 = inlined_call_operand.hbm [shape: s32[1,16], index: 1, kind: input, shape index: {}]
  %s2 = inlined_call_operand.hbm [shape: f32[8,32], index: 2, kind: output, shape index: {}]
  %s3 = sld [smem:[#allocation0]]
  $region30: #{tpu_custom_call.1} parent=0
    _
  %s5 = ssub.s32 1, %s3
  %s6 = scalar_select 0, %s5, %s3
  $region1: #{tpu_custom_call.1} parent=0
    #allocation2 [shape = 'u8[8192]{0}', space=vmem, size = 0x2000, scoped, tag = 'input window, operand 0, single buffered']
    #allocation3 [shape = 's32[1]{0}', space=sflag, size = 0x4, scoped, tag = 'scoped memory for tpu_custom_call.1']
    #allocation4 [shape = 's32[1]{0}', space=sflag, size = 0x4, scoped, tag = 'scoped memory for tpu_custom_call.1']
    #allocation5 [shape = 'u8[512]{0}', space=vmem, size = 0x400, scoped, tag = 'input window, operand 1, single buffered']
    #allocation6 [shape = 's32[1]{0}', space=sflag, size = 0x4, scoped, tag = 'scoped memory for tpu_custom_call.1']
    #allocation7 [shape = 'u8[4096]{0}', space=vmem, size = 0x1000, scoped, tag = 'output window, operand 0, single buffered']
    %7 = vsyncpa [#allocation3], 0
    %8 = vsyncpa [#allocation6], 0
    %9 = vsyncpa [#allocation4], 0
    // Predicated region
    $region2: #{tpu_custom_call.1} parent=1 // pred_check
      _
    $region3: #{tpu_custom_call.1} parent=1 // pred_check_branch
      %11 = sbr.rel (0) target = $region5
    $region4: #{tpu_custom_call.1} parent=1 // pred_region
      %13 = vsyncadd [#allocation3], 0
      %s14 = sshll.u32 %s0, 4
      %s15 = int_to_ptr.hbm [resolvable:$true] %s14
      %s16 = sshll.u32 [#allocation2], 4
      %s17 = int_to_ptr.vmem [resolvable:$true] %s16
      %22 = dma.hbm_to_vmem [thread:$0]  %s15, 256, %s17, [#allocation3], 128, 128, 8
    $region5: #{tpu_custom_call.1} parent=1 // pred_fallthru
      _
    // Predicated region
    $region6: #{tpu_custom_call.1} parent=1 // pred_check
      _
    $region7: #{tpu_custom_call.1} parent=1 // pred_check_branch
      %24 = sbr.rel (0) target = $region9
    $region8: #{tpu_custom_call.1} parent=1 // pred_region
      %26 = vsyncadd [#allocation6], 0
      %s28 = sshll.u32 %s1, 4
      %s29 = int_to_ptr.hbm [resolvable:$true] %s28
      %s30 = sshll.u32 [#allocation5], 4
      %s31 = int_to_ptr.vmem [resolvable:$true] %s30
      %33 = dma.hbm_to_vmem [thread:$0]  %s29, 16, %s31, [#allocation6]
    $region9: #{tpu_custom_call.1} parent=1 // pred_fallthru
      _
    // Predicated region
    $region10: #{tpu_custom_call.1} parent=1 // pred_check
      _
    $region11: #{tpu_custom_call.1} parent=1 // pred_check_branch
      %35 = sbr.rel (0) target = $region13
    $region12: #{tpu_custom_call.1} parent=1 // pred_region
      %37 = dma.done [#allocation3], 256
    $region13: #{tpu_custom_call.1} parent=1 // pred_fallthru
      _
    // Predicated region
    $region14: #{tpu_custom_call.1} parent=1 // pred_check
      _
    $region15: #{tpu_custom_call.1} parent=1 // pred_check_branch
      %39 = sbr.rel (0) target = $region17
    $region16: #{tpu_custom_call.1} parent=1 // pred_region
      %41 = dma.done [#allocation6], 16
    $region17: #{tpu_custom_call.1} parent=1 // pred_fallthru
      _
    %p43 = scmp.eq.s32.totalorder 0, 0
    // Predicated region
    $region18: #{tpu_custom_call.1} parent=1 // pred_check
      %p44 = pneg %p43
    $region19: #{tpu_custom_call.1} parent=1 // pred_check_branch
      %46 = sbr.rel (%p44) target = $region21
    $region20: #{tpu_custom_call.1} parent=1 // pred_region
      %vm47 = vcmask 261120
      %48 = vst.msk [vmem:[#allocation7] sm:$0xff] %vm47, 0.0
    $region21: #{tpu_custom_call.1} parent=1 // pred_fallthru
      _
    %v49 = vld [vmem:[#allocation2] sm:$0xff]
    %v50 = vld [vmem:[#allocation2 + $0x8] sm:$0xff]
    %v51 = vld [vmem:[#allocation5] sm:$0x1]
    %s52 = smul.u32 0, 16
    %v53 = vlaneseq
    %v54 = vshrl.u32 %v53, 7
    %v55 = vadd.s32 %v54, 8
    %v56 = vstv %s52
    %v57 = vadd.s32 %v56, %v54
    %v58 = vadd.s32 %v56, %v55
    %vm59 = vcmp.lt.s32.totalorder %v57, 12
    %vm60 = vcmp.lt.s32.totalorder %v58, 12
    %v61 = vsel %vm59, 1, 0
    %v62 = vsel %vm60, 1, 0
    %vm63 = vcmp.eq.s32.totalorder %v61, 1
    %vm64 = vcmp.eq.s32.totalorder %v62, 1
    %v65 = vsel %vm63, %v49, 0.0
    %v66 = vsel %vm64, %v50, 0.0
    %v67 = vpack.c.bf16 %v65, %v65
    %v68 = vpack.c.bf16 %v66, %v66
    %v69 = vunpack.c.l.bf16 %v67
    %v70 = vunpack.c.l.bf16 %v68
    %v71 = vsub.f32 %v65, %v69
    %v72 = vsub.f32 %v66, %v70
    %v73 = vpack.c.bf16 %v72, %v71
    %v74 = vperm.slane %v51, 0
    %vm75 = vcmp.eq.s32.totalorder %v54, %v74
    %v76 = vsel %vm75, 1, 0
    %v77 = vcvt.s32.f32 %v76
    %v78 = vpack.c.bf16 %v77, %v77
    %vm79 = vcmask 130048
    %v81 = vsel %vm79, %v78, 0
    %83 = vmatpush.bf16.msra.mxu0 0
    %84 = vmatpush.bf16.msra.mxu0 0
    %85 = vmatpush.bf16.msra.mxu0 0
    %86 = vmatpush.bf16.msra.mxu0 0
    %87 = vmatpush.bf16.msra.mxu0 0
    %88 = vmatpush.bf16.msra.mxu0 0
    %89 = vmatpush.bf16.msra.mxu0 0
    %90 = vmatpush.bf16.msra.mxu0 %v73
    %91 = vmatmul.bf16.gmra.mxu0 %v81
    %v92 = vpop.f32.mrf.mxu0
    %v93 = vadd.f32 0.0, %v92
    %v94 = vpop.f32.mrf.mxu0
    %95 = vdwg.mxu0
    %v98 = vunpack.c.l.b16 %v67
    %v99 = vunpack.c.l.b16 %v68
    %v100 = vpack.c.b16 %v99, %v98
    %102 = vmatpush.bf16.msra.mxu0 0
    %103 = vmatpush.bf16.msra.mxu0 0
    %104 = vmatpush.bf16.msra.mxu0 0
    %105 = vmatpush.bf16.msra.mxu0 0
    %106 = vmatpush.bf16.msra.mxu0 0
    %107 = vmatpush.bf16.msra.mxu0 0
    %108 = vmatpush.bf16.msra.mxu0 0
    %109 = vmatpush.bf16.msra.mxu0 %v100
    %110 = vmatmul.bf16.gmra.mxu0 %v81
    %v111 = vpop.f32.mrf.mxu0
    %v112 = vadd.f32 %v93, %v111
    %v113 = vpop.f32.mrf.mxu0
    %114 = vdwg.mxu0
    %v115 = vld [vmem:[#allocation7] sm:$0xff]
    %v116 = vadd.f32 %v115, %v112
    %vm117 = vcmask 261120
    %118 = vst.msk [vmem:[#allocation7] sm:$0xff] %vm117, %v116
    // Predicated region
    $region22: #{tpu_custom_call.1} parent=1 // pred_check
      _
    $region23: #{tpu_custom_call.1} parent=1 // pred_check_branch
      %120 = sbr.rel (0) target = $region25
    $region24: #{tpu_custom_call.1} parent=1 // pred_region
      %122 = vsyncadd [#allocation4], 0
      %s124 = sshll.u32 [#allocation7], 4
      %s125 = int_to_ptr.vmem [resolvable:$true] %s124
      %s126 = sshll.u32 %s2, 4
      %s127 = int_to_ptr.hbm [resolvable:$true] %s126
      %129 = dma.vmem_to_hbm [thread:$0]  %s125, 128, %s127, [#allocation4]
    $region25: #{tpu_custom_call.1} parent=1 // pred_fallthru
      _
    // Predicated region
    $region26: #{tpu_custom_call.1} parent=1 // pred_check
      _
    $region27: #{tpu_custom_call.1} parent=1 // pred_check_branch
      %131 = sbr.rel (0) target = $region29
    $region28: #{tpu_custom_call.1} parent=1 // pred_region
      %133 = dma.done [#allocation4], 128
    $region29: #{tpu_custom_call.1} parent=1 // pred_fallthru
      _
    %134 = vsyncpa [#allocation3], 1
    %135 = vsyncpa [#allocation6], 1
    %136 = vsyncpa [#allocation4], 1

</llo_original>
